<compile_context>
chip_gen: v7x
topology: tpu7x:2x2x1
jax: 0.10.0
libtpu: 0.0.40
codegen_flags: <defaults>
</compile_context>

<pallas_src>
import functools

import jax
import jax.numpy as jnp
from jax.experimental import pallas as pl
from jax.experimental.pallas import tpu as pltpu


def smooth_ce_kernel(x_ref, t_ref, o_ref, *, vocab, eps, lane_padded):
    # x_ref: (tile_rows, V) logits (bf16 or f32)   t_ref: (tile_rows, 1) int32 targets
    # o_ref: (tile_rows, 1) f32 per-token smoothed CE loss
    x = x_ref[...].astype(jnp.float32)          # upcast in-kernel; HBM traffic stays bf16
    _, v = x.shape

    # (1, V) lane iota; sublane-broadcast against the (rows, 1) targets.
    col = jax.lax.broadcasted_iota(jnp.int32, (1, v), 1)
    t = t_ref[...]                              # (rows, 1) int32
    onehot = col == t                           # (rows, V) bool

    inv_v = 1.0 / float(vocab)
    # Fused weight: (1-eps) on the target column + eps/V everywhere (mean term).
    w = jnp.where(onehot, (1.0 - eps) + eps * inv_v, eps * inv_v)

    if lane_padded:
        # V % 128 != 0: Mosaic pads the VMEM lanes; neutralize them. Mask the *product*
        # so NaN/Inf garbage in pad lanes cannot poison the sum (NaN * 0 == NaN).
        valid = col < vocab                     # (1, V)
        x_for_max = jnp.where(valid, x, jnp.float32(-1e30))
        wsum_terms = jnp.where(valid, x * w, 0.0)
    else:
        x_for_max = x
        wsum_terms = x * w

    # Numerically stable logsumexp per row.
    m = jnp.max(x_for_max, axis=-1, keepdims=True)
    s = jnp.sum(jnp.exp(x_for_max - m), axis=-1, keepdims=True)
    lse = m + jnp.log(s)

    wsum = jnp.sum(wsum_terms, axis=-1, keepdims=True)
    o_ref[...] = (lse - wsum).astype(o_ref.dtype)


def smooth_cross_entropy_loss(logits, target, label_smooth, *, tile_rows=None):
    """Pallas equivalent of SmoothCrossEntropyLoss.forward.

    logits: (..., V) float logits (bf16 or f32; streamed without host-side conversion)
    target: (...)    int class indices
    returns: (N,) f32 per-token loss, N = prod(leading dims) (unreduced, like the torch forward).
    """
    V = logits.shape[-1]
    x2 = logits.reshape(-1, V)                  # no copy, no dtype cast
    t2 = target.reshape(-1, 1).astype(jnp.int32)
    n = x2.shape[0]

    itemsize = x2.dtype.itemsize
    row_align = 8 if itemsize >= 4 else 16      # (8,128) f32 tile / (16,128) packed bf16 tile
    row_bytes = V * itemsize

    if tile_rows is None:
        # ~8 MiB input slab per grid step: amortizes the ~0.35 us/step overhead and sits on the
        # HBM roofline on v5e/v6e/v7x; double-buffered it stays within the vmem limit set below.
        target_bytes = 8 << 20
        tile_rows = max(row_align, (target_bytes // row_bytes) // row_align * row_align)
        tile_rows = min(tile_rows, 1024)
        # Keep >= 2 grid steps when possible so "parallel" shards across v7x's two TensorCores.
        half = pl.cdiv(pl.cdiv(n, 2), row_align) * row_align
        tile_rows = min(tile_rows, max(row_align, half))
    tile_rows = max(1, tile_rows)
    if n <= tile_rows:
        tile_rows = n                           # single full-array block (always legal)

    num_tiles = pl.cdiv(n, tile_rows)           # last block may overhang the input rows
    n_out = num_tiles * tile_rows               # output allocated padded -> no OOB writes at all

    slab_bytes = tile_rows * row_bytes
    # 2x double-buffered input slab + headroom; >=32 MiB (fine on v5e/v6e: 128 MiB physical),
    # capped at 64 MiB for v7x's smaller physical VMEM.
    vmem_limit = min(64 << 20, max(32 << 20, 2 * slab_bytes + (4 << 20)))

    kernel = functools.partial(
        smooth_ce_kernel,
        vocab=V,
        eps=float(label_smooth),
        lane_padded=(V % 128 != 0),
    )

    out = pl.pallas_call(
        kernel,
        out_shape=jax.ShapeDtypeStruct((n_out, 1), jnp.float32),
        grid=(num_tiles,),
        in_specs=[
            pl.BlockSpec((tile_rows, V), lambda i: (i, 0)),   # logits tile (streamed dtype)
            pl.BlockSpec((tile_rows, 1), lambda i: (i, 0)),   # target tile
        ],
        out_specs=pl.BlockSpec((tile_rows, 1), lambda i: (i, 0)),
        compiler_params=pltpu.CompilerParams(
            dimension_semantics=("parallel",),
            vmem_limit_bytes=vmem_limit,
        ),
    )(x2, t2)

    # TODO(synk): ignore_index / the nn.NLLLoss reduction are constructed but never used by the
    # original forward (it gathers manually and returns the unreduced loss), so they are
    # intentionally not implemented; out-of-range targets produce a bogus (not skipped) loss.
    return out[:n, 0]


def _reference(logits, target, eps):
    V = logits.shape[-1]
    x = logits.reshape(-1, V).astype(jnp.float32)
    t = target.reshape(-1)
    logp = jax.nn.log_softmax(x, axis=-1)
    nll = -jnp.take_along_axis(logp, t[:, None], axis=-1)[:, 0]
    smooth = -logp.mean(axis=-1)
    return (1.0 - eps) * nll + eps * smooth


if __name__ == "__main__":
    key = jax.random.PRNGKey(0)
    k1, k2, k3, k4 = jax.random.split(key, 4)
    eps = 0.1

    # Config 1: bf16 logits, vocab a multiple of 128, multi-step grid (fast unmasked path).
    batch, seq, vocab = 2, 128, 512
    logits = jax.random.normal(k1, (batch, seq, vocab), dtype=jnp.float32).astype(jnp.bfloat16)
    target = jax.random.randint(k2, (batch, seq), 0, vocab, dtype=jnp.int32)
    loss = smooth_cross_entropy_loss(logits, target, eps)
    jax.block_until_ready(loss)
    ref = _reference(logits, target, eps)
    assert loss.shape == ref.shape
    assert jnp.allclose(loss, ref, atol=1e-4, rtol=1e-4), "config 1 mismatch vs reference"

    # Config 2: f32 logits, ragged vocab (V % 128 != 0) and ragged rows (row-overhang path).
    batch2, seq2, vocab2 = 1, 13, 321
    logits2 = jax.random.normal(k3, (batch2, seq2, vocab2), dtype=jnp.float32)
    target2 = jax.random.randint(k4, (batch2, seq2), 0, vocab2, dtype=jnp.int32)
    loss2 = smooth_cross_entropy_loss(logits2, target2, eps)
    jax.block_until_ready(loss2)
    ref2 = _reference(logits2, target2, eps)
    assert loss2.shape == ref2.shape
    assert jnp.allclose(loss2, ref2, atol=1e-5, rtol=1e-5), "config 2 mismatch vs reference"

    print("KERNEL_OK")
</pallas_src>

<mosaic_0001>
module attributes {stable_mosaic.version = 11 : i64} {
  func.func @smooth_ce_kernel(%arg0: i32, %arg1: memref<128x512xbf16, #tpu.memory_space<vmem>>, %arg2: memref<128x1xi32, #tpu.memory_space<vmem>>, %arg3: memref<128x1xf32, #tpu.memory_space<vmem>>) attributes {dimension_semantics = [#tpu.dimension_semantics<parallel>], iteration_bounds = array<i64: 2>, scalar_prefetch = 0 : i64, scratch_operands = 0 : i64, tpu.core_type = #tpu.core_type<tc>, window_params = [{transform_indices = @transform_0, window_bounds = array<i64: 128, 512>}, {transform_indices = @transform_1, window_bounds = array<i64: 128, 1>}, {transform_indices = @transform_2, window_bounds = array<i64: 128, 1>}]} {
    %c0 = arith.constant 0 : index
    %c0_0 = arith.constant 0 : index
    %0 = vector.load %arg1[%c0, %c0_0] : memref<128x512xbf16, #tpu.memory_space<vmem>>, vector<128x512xbf16>
    %1 = arith.extf %0 : vector<128x512xbf16> to vector<128x512xf32>
    %2 = tpu.iota {dimensions = array<i32: 1>} : vector<1x512xi32>
    %c0_1 = arith.constant 0 : index
    %c0_2 = arith.constant 0 : index
    %3 = vector.load %arg2[%c0_1, %c0_2] : memref<128x1xi32, #tpu.memory_space<vmem>>, vector<128x1xi32>
    %4 = vector.broadcast %2 : vector<1x512xi32> to vector<128x512xi32>
    %5 = vector.broadcast %3 : vector<128x1xi32> to vector<128x512xi32>
    %6 = arith.cmpi eq, %4, %5 : vector<128x512xi32>
    %cst = arith.constant 0.9001953 : f32
    %cst_3 = arith.constant 1.95312503E-4 : f32
    %7 = vector.broadcast %cst : f32 to vector<128x512xf32>
    %8 = vector.broadcast %cst_3 : f32 to vector<128x512xf32>
    %9 = arith.select %6, %7, %8 : vector<128x512xi1>, vector<128x512xf32>
    %10 = arith.mulf %1, %9 : vector<128x512xf32>
    %cst_4 = arith.constant dense<0xFF800000> : vector<128xf32>
    %11 = vector.multi_reduction <maximumf>, %1, %cst_4 [1] : vector<128x512xf32> to vector<128xf32>
    %12 = vector.shape_cast %11 : vector<128xf32> to vector<128x1xf32>
    %13 = vector.broadcast %12 : vector<128x1xf32> to vector<128x512xf32>
    %14 = arith.subf %1, %13 : vector<128x512xf32>
    %15 = math.exp %14 : vector<128x512xf32>
    %cst_5 = arith.constant dense<0.000000e+00> : vector<128xf32>
    %16 = vector.multi_reduction <add>, %15, %cst_5 [1] : vector<128x512xf32> to vector<128xf32>
    %17 = vector.shape_cast %16 : vector<128xf32> to vector<128x1xf32>
    %18 = math.log %17 : vector<128x1xf32>
    %19 = arith.addf %12, %18 : vector<128x1xf32>
    %cst_6 = arith.constant dense<0.000000e+00> : vector<128xf32>
    %20 = vector.multi_reduction <add>, %10, %cst_6 [1] : vector<128x512xf32> to vector<128xf32>
    %21 = vector.shape_cast %20 : vector<128xf32> to vector<128x1xf32>
    %22 = arith.subf %19, %21 : vector<128x1xf32>
    %c0_7 = arith.constant 0 : index
    %c0_8 = arith.constant 0 : index
    %23 = vector.load %arg3[%c0_7, %c0_8] : memref<128x1xf32, #tpu.memory_space<vmem>>, vector<128x1xf32>
    tpu.vector_store %arg3[%c0_7, %c0_8], %22 {strides = array<i32>} : memref<128x1xf32, #tpu.memory_space<vmem>>, vector<128x1xf32>,
    return
  }
  func.func @transform_0(%arg0: i32) -> (i32, i32) {
    %c0_i32 = arith.constant 0 : i32
    %c0_i32_0 = arith.constant 0 : i32
    return %arg0, %c0_i32 : i32, i32
  }
  func.func @transform_1(%arg0: i32) -> (i32, i32) {
    %c0_i32 = arith.constant 0 : i32
    %c0_i32_0 = arith.constant 0 : i32
    return %arg0, %c0_i32 : i32, i32
  }
  func.func @transform_2(%arg0: i32) -> (i32, i32) {
    %c0_i32 = arith.constant 0 : i32
    %c0_i32_0 = arith.constant 0 : i32
    return %arg0, %c0_i32 : i32, i32
  }
}

</mosaic_0001>

<llo_original>
// kernel: tpu_custom_call.1
$region0: #{tpu_custom_call.1}
  #allocation0 [shape = 'u32[]', space=smem, size = 0x4, offset = 0x4, fixed_abs, tag = 'smem constant byte address 0x4 - core index']
  #allocation1 [shape = 'u32[144,128]{1,0:T(1,128)}', space=vmem, size = 0x12000, scoped, tag = 'internal scratch']
  %s0 = inlined_call_operand.hbm [shape: bf16[256,512], index: 0, kind: input, shape index: {}]
  %s1 = inlined_call_operand.vmem [shape: s32[256,1], index: 1, kind: input, shape index: {}]
  %s2 = inlined_call_operand.vmem [shape: f32[256,1], index: 2, kind: output, shape index: {}]
  %s3 = sld [smem:[#allocation0]]
  $region45: #{tpu_custom_call.1} parent=0
    _
  %s5 = ssub.s32 1, %s3
  %s6 = scalar_select 0, %s5, %s3
  $region1: #{tpu_custom_call.1} parent=0
    #allocation2 [shape = 'u8[262144]{0}', space=vmem, size = 0x40000, scoped, tag = 'input window, operand 0']
    #allocation3 [shape = 's32[2]{0}', space=sflag, size = 0x8, scoped, tag = 'scoped memory for tpu_custom_call.1']
    %7 = vsyncpa [#allocation3], 0
    %s8 = scalar_lea.sflag [#allocation3], 1
    %9 = vsyncpa %s8, 0
    loop: start=0, step=1, limit=4
    $region2: #{tpu_custom_call.1} parent=1 // loop_pre_header
      _
    $region3: #{tpu_custom_call.1} parent=1 // loop_header
      %s11 = sphi 0, %s15
      %p12 = scmp.ge.s32.totalorder %s11, 4
      %s21 = sphi 0, %s23
      %s24 = sphi 0, %s21
      %s25 = sphi 0, %s24
      %s41 = sphi 0, %s25
      %s47 = sphi 0, %s49
      %s50 = sphi 0, %s47
      %s51 = sphi 0, %s50
      %s67 = sphi 0, %s51
      %s73 = sphi 0, %s75
      %s76 = sphi 0, %s73
      %s77 = sphi 0, %s76
      %s93 = sphi 0, %s77
    $region4: #{tpu_custom_call.1} parent=1 // loop_header_branch
      %14 = sbr.rel (%p12) target = $region8
    $region5: #{tpu_custom_call.1} parent=1 // loop_body
      %s16 = ssub.s32 %s11, 1
      %s17 = ssub.s32 %s11, 2
      %s18 = sadd.s32 %s11, 1
      %s19 = ssub.s32 %s11, %s18
      %p20 = scmp.eq.s32.totalorder %s19, 0
      %s22 = sadd.s32 %s21, 1
      %s23 = scalar_select %p20, %s21, %s22
      %p26 = pneg %p20
      %p27 = scmp.eq.s32.totalorder %s11, 1
      %p28 = por %p26, %p27
      %p29 = scmp.ne.s32.totalorder %s21, %s24
      %p30 = scmp.eq.s32.totalorder %s11, 0
      %p31 = por %p29, %p30
      %p32 = scmp.ne.s32.totalorder %s21, %s24
      %p33 = scmp.eq.s32.totalorder %s16, 1
      %p34 = por %p32, %p33
      %p35 = scmp.ne.s32.totalorder %s24, %s25
      %p36 = scmp.eq.s32.totalorder %s16, 0
      %p37 = por %p35, %p36
      %p38 = scmp.ne.s32.totalorder %s24, %s25
      %p39 = scmp.eq.s32.totalorder %s17, 1
      %p40 = por %p38, %p39
      %p42 = scmp.ne.s32.totalorder %s25, %s41
      %p43 = scmp.eq.s32.totalorder %s17, 0
      %p44 = por %p42, %p43
      %s45 = ssub.s32 %s11, %s18
      %p46 = scmp.eq.s32.totalorder %s45, 0
      %s48 = sadd.s32 %s47, 1
      %s49 = scalar_select %p46, %s47, %s48
      %p52 = pneg %p46
      %p53 = scmp.eq.s32.totalorder %s11, 1
      %p54 = por %p52, %p53
      %p55 = scmp.ne.s32.totalorder %s47, %s50
      %p56 = scmp.eq.s32.totalorder %s11, 0
      %p57 = por %p55, %p56
      %p58 = scmp.ne.s32.totalorder %s47, %s50
      %p59 = scmp.eq.s32.totalorder %s16, 1
      %p60 = por %p58, %p59
      %p61 = scmp.ne.s32.totalorder %s50, %s51
      %p62 = scmp.eq.s32.totalorder %s16, 0
      %p63 = por %p61, %p62
      %p64 = scmp.ne.s32.totalorder %s50, %s51
      %p65 = scmp.eq.s32.totalorder %s17, 1
      %p66 = por %p64, %p65
      %p68 = scmp.ne.s32.totalorder %s51, %s67
      %p69 = scmp.eq.s32.totalorder %s17, 0
      %p70 = por %p68, %p69
      %s71 = ssub.s32 %s11, %s18
      %p72 = scmp.eq.s32.totalorder %s71, 0
      %s74 = sadd.s32 %s73, 1
      %s75 = scalar_select %p72, %s73, %s74
      %p78 = pneg %p72
      %p79 = scmp.eq.s32.totalorder %s11, 1
      %p80 = por %p78, %p79
      %p81 = scmp.ne.s32.totalorder %s73, %s76
      %p82 = scmp.eq.s32.totalorder %s11, 0
      %p83 = por %p81, %p82
      %p84 = scmp.ne.s32.totalorder %s73, %s76
      %p85 = scmp.eq.s32.totalorder %s16, 1
      %p86 = por %p84, %p85
      %p87 = scmp.ne.s32.totalorder %s76, %s77
      %p88 = scmp.eq.s32.totalorder %s16, 0
      %p89 = por %p87, %p88
      %p90 = scmp.ne.s32.totalorder %s76, %s77
      %p91 = scmp.eq.s32.totalorder %s17, 1
      %p92 = por %p90, %p91
      %p94 = scmp.ne.s32.totalorder %s77, %s93
      %p95 = scmp.eq.s32.totalorder %s17, 0
      %p96 = por %p94, %p95
      %p97 = scmp.le.s32.totalorder 1, %s11
      %p98 = scmp.lt.s32.totalorder %s11, 3
      %p99 = pnand %p97, %p98
      %p100 = pneg %p99
      // Predicated region
      $region9: #{tpu_custom_call.1} parent=5 // pred_check
        _
      $region10: #{tpu_custom_call.1} parent=5 // pred_check_branch
        %102 = sbr.rel (%p99) target = $region12
      $region11: #{tpu_custom_call.1} parent=5 // pred_region
        %s103 = ssub.s32 %s11, 1
      $region12: #{tpu_custom_call.1} parent=5 // pred_fallthru
        _
      %p104 = scmp.lt.s32.totalorder %s11, 2
      // Predicated region
      $region13: #{tpu_custom_call.1} parent=5 // pred_check
        %p105 = pneg %p104
      $region14: #{tpu_custom_call.1} parent=5 // pred_check_branch
        %107 = sbr.rel (%p105) target = $region16
      $region15: #{tpu_custom_call.1} parent=5 // pred_region
        // Predicated region
        $region17: #{tpu_custom_call.1} parent=15 // pred_check
          %p108 = pneg %p31
        $region18: #{tpu_custom_call.1} parent=15 // pred_check_branch
          %110 = sbr.rel (%p108) target = $region20
        $region19: #{tpu_custom_call.1} parent=15 // pred_region
          %s111 = sand.u32 %s21, 1
          %s112 = scalar_lea.sflag [#allocation3], %s111
          %s113 = sand.u32 %s21, 1
          %s114 = smul.addr %s113, 256
          %s115 = scalar_lea.vmem [#allocation2], %s114
          %s116 = smul.u32 16, %s11
          %s118 = ssub.s32 4096, 4096
          %119 = vsyncadd %s112, %s118
          %s120 = smul.addr %s116, 4
          %s121 = smul.addr %s120, 64
          %s122 = scalar_lea.hbm %s0, %s121
          %s123 = sshll.u32 %s115, 4
          %s124 = int_to_ptr.vmem [resolvable:$true] %s123
          %129 = dma.hbm_to_vmem [thread:$0]  %s122, 4096, %s124, %s112, 256, 256, 16
        $region20: #{tpu_custom_call.1} parent=15 // pred_fallthru
          _
        // Predicated region
        $region21: #{tpu_custom_call.1} parent=15 // pred_check
          %p130 = pneg %p57
        $region22: #{tpu_custom_call.1} parent=15 // pred_check_branch
          %132 = sbr.rel (%p130) target = $region24
        $region23: #{tpu_custom_call.1} parent=15 // pred_region
          %s133 = smul.u32 16, %s11
          %p134 = scmp.lt.s32.totalorder %s133, 31
          %s135 = scalar_select %p134, %s133, 31
          %s136 = smul.addr %s135, 8
          %s137 = scalar_lea.vmem %s1, %s136
          %s138 = smul.u32 16, %s11
        $region24: #{tpu_custom_call.1} parent=15 // pred_fallthru
          _
      $region16: #{tpu_custom_call.1} parent=5 // pred_fallthru
        _
      %p139 = scmp.le.s32.totalorder 1, %s11
      %p140 = scmp.lt.s32.totalorder %s11, 3
      %p141 = pnand %p139, %p140
      %p142 = pneg %p141
      // Predicated region
      $region25: #{tpu_custom_call.1} parent=5 // pred_check
        _
      $region26: #{tpu_custom_call.1} parent=5 // pred_check_branch
        %144 = sbr.rel (%p141) target = $region28
      $region27: #{tpu_custom_call.1} parent=5 // pred_region
        %s145 = ssub.s32 %s11, 1
        %s146 = sand.u32 %s24, 1
        %s147 = scalar_lea.sflag [#allocation3], %s146
        %s148 = sand.u32 %s24, 1
        %s149 = smul.addr %s148, 256
        %s150 = scalar_lea.vmem [#allocation2], %s149
        // Predicated region
        $region29: #{tpu_custom_call.1} parent=27 // pred_check
          %p151 = pneg %p37
        $region30: #{tpu_custom_call.1} parent=27 // pred_check_branch
          %153 = sbr.rel (%p151) target = $region32
        $region31: #{tpu_custom_call.1} parent=27 // pred_region
          %154 = dma.done %s147, 4096
        $region32: #{tpu_custom_call.1} parent=27 // pred_fallthru
          _
        %s155 = sand.u32 %s24, 1
        %s156 = scalar_lea.sflag [#allocation3], %s155
        %s157 = sand.u32 %s24, 1
        %s158 = smul.addr %s157, 256
        %s159 = scalar_lea.vmem [#allocation2], %s158
        %p160 = pneg %p37
        %p161 = pneg %p34
        %s162 = smul.u32 16, %s16
        %p163 = scmp.lt.s32.totalorder %s162, 31
        %s164 = scalar_select %p163, %s162, 31
        %s165 = smul.addr %s164, 8
        %s166 = scalar_lea.vmem %s1, %s165
        %p167 = pneg %p63
        %p168 = pneg %p60
        %p169 = pneg %p89
        %p170 = pneg %p86
        %s171 = smul.u32 16, %s16
        %p172 = scmp.lt.s32.totalorder %s171, 31
        %s173 = scalar_select %p172, %s171, 31
        %s174 = smul.addr %s173, 8
        %s175 = scalar_lea.vmem %s2, %s174
        %s176 = smul.u32 16, %s16
        %s177 = smul.u32 16, %s16
        %p178 = scmp.lt.s32.totalorder %s177, 31
        %s179 = scalar_select %p178, %s177, 31
        %s180 = smul.addr %s179, 8
        %s181 = scalar_lea.vmem %s1, %s180
        %s182 = smul.u32 16, %s16
        %s183 = smul.u32 16, %s16
        %p184 = scmp.lt.s32.totalorder %s183, 31
        %s185 = scalar_select %p184, %s183, 31
        %s186 = smul.addr %s185, 8
        %s187 = scalar_lea.vmem %s2, %s186
        %s188 = smul.u32 16, %s16
        %v189 = vld [vmem:[%s150] sm:$0xff]
        %v190 = vld [vmem:[%s150 + $0x8] sm:$0xff]
        %v191 = vld [vmem:[%s150 + $0x10] sm:$0xff]
        %v192 = vld [vmem:[%s150 + $0x18] sm:$0xff]
        %v193 = vld [vmem:[%s150 + $0x20] sm:$0xff]
        %v194 = vld [vmem:[%s150 + $0x28] sm:$0xff]
        %v195 = vld [vmem:[%s150 + $0x30] sm:$0xff]
        %v196 = vld [vmem:[%s150 + $0x38] sm:$0xff]
        %v197 = vld [vmem:[%s150 + $0x40] sm:$0xff]
        %v198 = vld [vmem:[%s150 + $0x48] sm:$0xff]
        %v199 = vld [vmem:[%s150 + $0x50] sm:$0xff]
        %v200 = vld [vmem:[%s150 + $0x58] sm:$0xff]
        %v201 = vld [vmem:[%s150 + $0x60] sm:$0xff]
        %v202 = vld [vmem:[%s150 + $0x68] sm:$0xff]
        %v203 = vld [vmem:[%s150 + $0x70] sm:$0xff]
        %v204 = vld [vmem:[%s150 + $0x78] sm:$0xff]
        %v205 = vld [vmem:[%s150 + $0x80] sm:$0xff]
        %v206 = vld [vmem:[%s150 + $0x88] sm:$0xff]
        %v207 = vld [vmem:[%s150 + $0x90] sm:$0xff]
        %v208 = vld [vmem:[%s150 + $0x98] sm:$0xff]
        %v209 = vld [vmem:[%s150 + $0xa0] sm:$0xff]
        %v210 = vld [vmem:[%s150 + $0xa8] sm:$0xff]
        %v211 = vld [vmem:[%s150 + $0xb0] sm:$0xff]
        %v212 = vld [vmem:[%s150 + $0xb8] sm:$0xff]
        %v213 = vld [vmem:[%s150 + $0xc0] sm:$0xff]
        %v214 = vld [vmem:[%s150 + $0xc8] sm:$0xff]
        %v215 = vld [vmem:[%s150 + $0xd0] sm:$0xff]
        %v216 = vld [vmem:[%s150 + $0xd8] sm:$0xff]
        %v217 = vld [vmem:[%s150 + $0xe0] sm:$0xff]
        %v218 = vld [vmem:[%s150 + $0xe8] sm:$0xff]
        %v219 = vld [vmem:[%s150 + $0xf0] sm:$0xff]
        %v220 = vld [vmem:[%s150 + $0xf8] sm:$0xff]
        %v221 = vunpack.c.l.bf16 %v189
        %v222 = vunpack.c.h.bf16 %v189
        %v223 = vunpack.c.l.bf16 %v190
        %v224 = vunpack.c.h.bf16 %v190
        %v225 = vunpack.c.l.bf16 %v191
        %v226 = vunpack.c.h.bf16 %v191
        %v227 = vunpack.c.l.bf16 %v192
        %v228 = vunpack.c.h.bf16 %v192
        %v229 = vunpack.c.l.bf16 %v193
        %v230 = vunpack.c.h.bf16 %v193
        %v231 = vunpack.c.l.bf16 %v194
        %v232 = vunpack.c.h.bf16 %v194
        %v233 = vunpack.c.l.bf16 %v195
        %v234 = vunpack.c.h.bf16 %v195
        %v235 = vunpack.c.l.bf16 %v196
        %v236 = vunpack.c.h.bf16 %v196
        %v237 = vunpack.c.l.bf16 %v197
        %v238 = vunpack.c.h.bf16 %v197
        %v239 = vunpack.c.l.bf16 %v198
        %v240 = vunpack.c.h.bf16 %v198
        %v241 = vunpack.c.l.bf16 %v199
        %v242 = vunpack.c.h.bf16 %v199
        %v243 = vunpack.c.l.bf16 %v200
        %v244 = vunpack.c.h.bf16 %v200
        %v245 = vunpack.c.l.bf16 %v201
        %v246 = vunpack.c.h.bf16 %v201
        %v247 = vunpack.c.l.bf16 %v202
        %v248 = vunpack.c.h.bf16 %v202
        %v249 = vunpack.c.l.bf16 %v203
        %v250 = vunpack.c.h.bf16 %v203
        %v251 = vunpack.c.l.bf16 %v204
        %v252 = vunpack.c.h.bf16 %v204
        %v253 = vunpack.c.l.bf16 %v205
        %v254 = vunpack.c.h.bf16 %v205
        %v255 = vunpack.c.l.bf16 %v206
        %v256 = vunpack.c.h.bf16 %v206
        %v257 = vunpack.c.l.bf16 %v207
        %v258 = vunpack.c.h.bf16 %v207
        %v259 = vunpack.c.l.bf16 %v208
        %v260 = vunpack.c.h.bf16 %v208
        %v261 = vunpack.c.l.bf16 %v209
        %v262 = vunpack.c.h.bf16 %v209
        %v263 = vunpack.c.l.bf16 %v210
        %v264 = vunpack.c.h.bf16 %v210
        %v265 = vunpack.c.l.bf16 %v211
        %v266 = vunpack.c.h.bf16 %v211
        %v267 = vunpack.c.l.bf16 %v212
        %v268 = vunpack.c.h.bf16 %v212
        %v269 = vunpack.c.l.bf16 %v213
        %v270 = vunpack.c.h.bf16 %v213
        %v271 = vunpack.c.l.bf16 %v214
        %v272 = vunpack.c.h.bf16 %v214
        %v273 = vunpack.c.l.bf16 %v215
        %v274 = vunpack.c.h.bf16 %v215
        %v275 = vunpack.c.l.bf16 %v216
        %v276 = vunpack.c.h.bf16 %v216
        %v277 = vunpack.c.l.bf16 %v217
        %v278 = vunpack.c.h.bf16 %v217
        %v279 = vunpack.c.l.bf16 %v218
        %v280 = vunpack.c.h.bf16 %v218
        %v281 = vunpack.c.l.bf16 %v219
        %v282 = vunpack.c.h.bf16 %v219
        %v283 = vunpack.c.l.bf16 %v220
        %v284 = vunpack.c.h.bf16 %v220
        %v285 = vlaneseq
        %v286 = vand.u32 %v285, 127
        %v287 = vadd.s32 %v286, 128
        %v288 = vadd.s32 %v286, 256
        %v289 = vadd.s32 %v286, 384
        %v290 = vld [vmem:[%s181] sm:$0xff]
        %v291 = vld [vmem:[%s181 + $0x8] sm:$0xff]
        %v292 = vld [vmem:[%s181 + $0x10] sm:$0xff]
        %v293 = vld [vmem:[%s181 + $0x18] sm:$0xff]
        %v294 = vld [vmem:[%s181 + $0x20] sm:$0xff]
        %v295 = vld [vmem:[%s181 + $0x28] sm:$0xff]
        %v296 = vld [vmem:[%s181 + $0x30] sm:$0xff]
        %v297 = vld [vmem:[%s181 + $0x38] sm:$0xff]
        %v298 = vld [vmem:[%s181 + $0x40] sm:$0xff]
        %v299 = vld [vmem:[%s181 + $0x48] sm:$0xff]
        %v300 = vld [vmem:[%s181 + $0x50] sm:$0xff]
        %v301 = vld [vmem:[%s181 + $0x58] sm:$0xff]
        %v302 = vld [vmem:[%s181 + $0x60] sm:$0xff]
        %v303 = vld [vmem:[%s181 + $0x68] sm:$0xff]
        %v304 = vld [vmem:[%s181 + $0x70] sm:$0xff]
        %v305 = vld [vmem:[%s181 + $0x78] sm:$0xff]
        %306 = vset.pattern.permute.xlu0 0
        %307 = vperm.xlu0 %306, %v290
        %v308 = vpop.permute.xlu0 %307
        %309 = vset.pattern.permute.xlu0 0
        %310 = vperm.xlu0 %309, %v291
        %v311 = vpop.permute.xlu0 %310
        %312 = vset.pattern.permute.xlu0 0
        %313 = vperm.xlu0 %312, %v292
        %v314 = vpop.permute.xlu0 %313
        %315 = vset.pattern.permute.xlu0 0
        %316 = vperm.xlu0 %315, %v293
        %v317 = vpop.permute.xlu0 %316
        %318 = vset.pattern.permute.xlu0 0
        %319 = vperm.xlu0 %318, %v294
        %v320 = vpop.permute.xlu0 %319
        %321 = vset.pattern.permute.xlu0 0
        %322 = vperm.xlu0 %321, %v295
        %v323 = vpop.permute.xlu0 %322
        %324 = vset.pattern.permute.xlu0 0
        %325 = vperm.xlu0 %324, %v296
        %v326 = vpop.permute.xlu0 %325
        %327 = vset.pattern.permute.xlu0 0
        %328 = vperm.xlu0 %327, %v297
        %v329 = vpop.permute.xlu0 %328
        %330 = vset.pattern.permute.xlu0 0
        %331 = vperm.xlu0 %330, %v298
        %v332 = vpop.permute.xlu0 %331
        %333 = vset.pattern.permute.xlu0 0
        %334 = vperm.xlu0 %333, %v299
        %v335 = vpop.permute.xlu0 %334
        %336 = vset.pattern.permute.xlu0 0
        %337 = vperm.xlu0 %336, %v300
        %v338 = vpop.permute.xlu0 %337
        %339 = vset.pattern.permute.xlu0 0
        %340 = vperm.xlu0 %339, %v301
        %v341 = vpop.permute.xlu0 %340
        %342 = vset.pattern.permute.xlu0 0
        %343 = vperm.xlu0 %342, %v302
        %v344 = vpop.permute.xlu0 %343
        %345 = vset.pattern.permute.xlu0 0
        %346 = vperm.xlu0 %345, %v303
        %v347 = vpop.permute.xlu0 %346
        %348 = vset.pattern.permute.xlu0 0
        %349 = vperm.xlu0 %348, %v304
        %v350 = vpop.permute.xlu0 %349
        %351 = vset.pattern.permute.xlu0 0
        %352 = vperm.xlu0 %351, %v305
        %v353 = vpop.permute.xlu0 %352
        %vm354 = vcmp.eq.s32.totalorder %v286, %v308
        %vm355 = vcmp.eq.s32.totalorder %v287, %v308
        %vm356 = vcmp.eq.s32.totalorder %v288, %v308
        %vm357 = vcmp.eq.s32.totalorder %v289, %v308
        %vm358 = vcmp.eq.s32.totalorder %v286, %v311
        %vm359 = vcmp.eq.s32.totalorder %v287, %v311
        %vm360 = vcmp.eq.s32.totalorder %v288, %v311
        %vm361 = vcmp.eq.s32.totalorder %v289, %v311
        %vm362 = vcmp.eq.s32.totalorder %v286, %v314
        %vm363 = vcmp.eq.s32.totalorder %v287, %v314
        %vm364 = vcmp.eq.s32.totalorder %v288, %v314
        %vm365 = vcmp.eq.s32.totalorder %v289, %v314
        %vm366 = vcmp.eq.s32.totalorder %v286, %v317
        %vm367 = vcmp.eq.s32.totalorder %v287, %v317
        %vm368 = vcmp.eq.s32.totalorder %v288, %v317
        %vm369 = vcmp.eq.s32.totalorder %v289, %v317
        %vm370 = vcmp.eq.s32.totalorder %v286, %v320
        %vm371 = vcmp.eq.s32.totalorder %v287, %v320
        %vm372 = vcmp.eq.s32.totalorder %v288, %v320
        %vm373 = vcmp.eq.s32.totalorder %v289, %v320
        %vm374 = vcmp.eq.s32.totalorder %v286, %v323
        %vm375 = vcmp.eq.s32.totalorder %v287, %v323
        %vm376 = vcmp.eq.s32.totalorder %v288, %v323
        %vm377 = vcmp.eq.s32.totalorder %v289, %v323
        %vm378 = vcmp.eq.s32.totalorder %v286, %v326
        %vm379 = vcmp.eq.s32.totalorder %v287, %v326
        %vm380 = vcmp.eq.s32.totalorder %v288, %v326
        %vm381 = vcmp.eq.s32.totalorder %v289, %v326
        %vm382 = vcmp.eq.s32.totalorder %v286, %v329
        %vm383 = vcmp.eq.s32.totalorder %v287, %v329
        %vm384 = vcmp.eq.s32.totalorder %v288, %v329
        %vm385 = vcmp.eq.s32.totalorder %v289, %v329
        %vm386 = vcmp.eq.s32.totalorder %v286, %v332
        %vm387 = vcmp.eq.s32.totalorder %v287, %v332
        %vm388 = vcmp.eq.s32.totalorder %v288, %v332
        %vm389 = vcmp.eq.s32.totalorder %v289, %v332
        %vm390 = vcmp.eq.s32.totalorder %v286, %v335
        %vm391 = vcmp.eq.s32.totalorder %v287, %v335
        %vm392 = vcmp.eq.s32.totalorder %v288, %v335
        %vm393 = vcmp.eq.s32.totalorder %v289, %v335
        %vm394 = vcmp.eq.s32.totalorder %v286, %v338
        %vm395 = vcmp.eq.s32.totalorder %v287, %v338
        %vm396 = vcmp.eq.s32.totalorder %v288, %v338
        %vm397 = vcmp.eq.s32.totalorder %v289, %v338
        %vm398 = vcmp.eq.s32.totalorder %v286, %v341
        %vm399 = vcmp.eq.s32.totalorder %v287, %v341
        %vm400 = vcmp.eq.s32.totalorder %v288, %v341
        %vm401 = vcmp.eq.s32.totalorder %v289, %v341
        %vm402 = vcmp.eq.s32.totalorder %v286, %v344
        %vm403 = vcmp.eq.s32.totalorder %v287, %v344
        %vm404 = vcmp.eq.s32.totalorder %v288, %v344
        %vm405 = vcmp.eq.s32.totalorder %v289, %v344
        %vm406 = vcmp.eq.s32.totalorder %v286, %v347
        %vm407 = vcmp.eq.s32.totalorder %v287, %v347
        %vm408 = vcmp.eq.s32.totalorder %v288, %v347
        %vm409 = vcmp.eq.s32.totalorder %v289, %v347
        %vm410 = vcmp.eq.s32.totalorder %v286, %v350
        %vm411 = vcmp.eq.s32.totalorder %v287, %v350
        %vm412 = vcmp.eq.s32.totalorder %v288, %v350
        %vm413 = vcmp.eq.s32.totalorder %v289, %v350
        %vm414 = vcmp.eq.s32.totalorder %v286, %v353
        %vm415 = vcmp.eq.s32.totalorder %v287, %v353
        %vm416 = vcmp.eq.s32.totalorder %v288, %v353
        %vm417 = vcmp.eq.s32.totalorder %v289, %v353
        %v418 = vsel %vm354, 0.9001953, 0.0001953125
        %v419 = vsel %vm355, 0.9001953, 0.0001953125
        %v420 = vsel %vm356, 0.9001953, 0.0001953125
        %v421 = vsel %vm357, 0.9001953, 0.0001953125
        %v422 = vsel %vm358, 0.9001953, 0.0001953125
        %v423 = vsel %vm359, 0.9001953, 0.0001953125
        %v424 = vsel %vm360, 0.9001953, 0.0001953125
        %v425 = vsel %vm361, 0.9001953, 0.0001953125
        %v426 = vsel %vm362, 0.9001953, 0.0001953125
        %v427 = vsel %vm363, 0.9001953, 0.0001953125
        %v428 = vsel %vm364, 0.9001953, 0.0001953125
        %v429 = vsel %vm365, 0.9001953, 0.0001953125
        %v430 = vsel %vm366, 0.9001953, 0.0001953125
        %v431 = vsel %vm367, 0.9001953, 0.0001953125
        %v432 = vsel %vm368, 0.9001953, 0.0001953125
        %v433 = vsel %vm369, 0.9001953, 0.0001953125
        %v434 = vsel %vm370, 0.9001953, 0.0001953125
        %v435 = vsel %vm371, 0.9001953, 0.0001953125
        %v436 = vsel %vm372, 0.9001953, 0.0001953125
        %v437 = vsel %vm373, 0.9001953, 0.0001953125
        %v438 = vsel %vm374, 0.9001953, 0.0001953125
        %v439 = vsel %vm375, 0.9001953, 0.0001953125
        %v440 = vsel %vm376, 0.9001953, 0.0001953125
        %v441 = vsel %vm377, 0.9001953, 0.0001953125
        %v442 = vsel %vm378, 0.9001953, 0.0001953125
        %v443 = vsel %vm379, 0.9001953, 0.0001953125
        %v444 = vsel %vm380, 0.9001953, 0.0001953125
        %v445 = vsel %vm381, 0.9001953, 0.0001953125
        %v446 = vsel %vm382, 0.9001953, 0.0001953125
        %v447 = vsel %vm383, 0.9001953, 0.0001953125
        %v448 = vsel %vm384, 0.9001953, 0.0001953125
        %v449 = vsel %vm385, 0.9001953, 0.0001953125
        %v450 = vsel %vm386, 0.9001953, 0.0001953125
        %v451 = vsel %vm387, 0.9001953, 0.0001953125
        %v452 = vsel %vm388, 0.9001953, 0.0001953125
        %v453 = vsel %vm389, 0.9001953, 0.0001953125
        %v454 = vsel %vm390, 0.9001953, 0.0001953125
        %v455 = vsel %vm391, 0.9001953, 0.0001953125
        %v456 = vsel %vm392, 0.9001953, 0.0001953125
        %v457 = vsel %vm393, 0.9001953, 0.0001953125
        %v458 = vsel %vm394, 0.9001953, 0.0001953125
        %v459 = vsel %vm395, 0.9001953, 0.0001953125
        %v460 = vsel %vm396, 0.9001953, 0.0001953125
        %v461 = vsel %vm397, 0.9001953, 0.0001953125
        %v462 = vsel %vm398, 0.9001953, 0.0001953125
        %v463 = vsel %vm399, 0.9001953, 0.0001953125
        %v464 = vsel %vm400, 0.9001953, 0.0001953125
        %v465 = vsel %vm401, 0.9001953, 0.0001953125
        %v466 = vsel %vm402, 0.9001953, 0.0001953125
        %v467 = vsel %vm403, 0.9001953, 0.0001953125
        %v468 = vsel %vm404, 0.9001953, 0.0001953125
        %v469 = vsel %vm405, 0.9001953, 0.0001953125
        %v470 = vsel %vm406, 0.9001953, 0.0001953125
        %v471 = vsel %vm407, 0.9001953, 0.0001953125
        %v472 = vsel %vm408, 0.9001953, 0.0001953125
        %v473 = vsel %vm409, 0.9001953, 0.0001953125
        %v474 = vsel %vm410, 0.9001953, 0.0001953125
        %v475 = vsel %vm411, 0.9001953, 0.0001953125
        %v476 = vsel %vm412, 0.9001953, 0.0001953125
        %v477 = vsel %vm413, 0.9001953, 0.0001953125
        %v478 = vsel %vm414, 0.9001953, 0.0001953125
        %v479 = vsel %vm415, 0.9001953, 0.0001953125
        %v480 = vsel %vm416, 0.9001953, 0.0001953125
        %v481 = vsel %vm417, 0.9001953, 0.0001953125
        %v482 = vmul.f32 %v221, %v418
        %v483 = vmul.f32 %v222, %v419
        %v484 = vmul.f32 %v223, %v420
        %v485 = vmul.f32 %v224, %v421
        %v486 = vmul.f32 %v225, %v422
        %v487 = vmul.f32 %v226, %v423
        %v488 = vmul.f32 %v227, %v424
        %v489 = vmul.f32 %v228, %v425
        %v490 = vmul.f32 %v229, %v426
        %v491 = vmul.f32 %v230, %v427
        %v492 = vmul.f32 %v231, %v428
        %v493 = vmul.f32 %v232, %v429
        %v494 = vmul.f32 %v233, %v430
        %v495 = vmul.f32 %v234, %v431
        %v496 = vmul.f32 %v235, %v432
        %v497 = vmul.f32 %v236, %v433
        %v498 = vmul.f32 %v237, %v434
        %v499 = vmul.f32 %v238, %v435
        %v500 = vmul.f32 %v239, %v436
        %v501 = vmul.f32 %v240, %v437
        %v502 = vmul.f32 %v241, %v438
        %v503 = vmul.f32 %v242, %v439
        %v504 = vmul.f32 %v243, %v440
        %v505 = vmul.f32 %v244, %v441
        %v506 = vmul.f32 %v245, %v442
        %v507 = vmul.f32 %v246, %v443
        %v508 = vmul.f32 %v247, %v444
        %v509 = vmul.f32 %v248, %v445
        %v510 = vmul.f32 %v249, %v446
        %v511 = vmul.f32 %v250, %v447
        %v512 = vmul.f32 %v251, %v448
        %v513 = vmul.f32 %v252, %v449
        %v514 = vmul.f32 %v253, %v450
        %v515 = vmul.f32 %v254, %v451
        %v516 = vmul.f32 %v255, %v452
        %v517 = vmul.f32 %v256, %v453
        %v518 = vmul.f32 %v257, %v454
        %v519 = vmul.f32 %v258, %v455
        %v520 = vmul.f32 %v259, %v456
        %v521 = vmul.f32 %v260, %v457
        %v522 = vmul.f32 %v261, %v458
        %v523 = vmul.f32 %v262, %v459
        %v524 = vmul.f32 %v263, %v460
        %v525 = vmul.f32 %v264, %v461
        %v526 = vmul.f32 %v265, %v462
        %v527 = vmul.f32 %v266, %v463
        %v528 = vmul.f32 %v267, %v464
        %v529 = vmul.f32 %v268, %v465
        %v530 = vmul.f32 %v269, %v466
        %v531 = vmul.f32 %v270, %v467
        %v532 = vmul.f32 %v271, %v468
        %v533 = vmul.f32 %v272, %v469
        %v534 = vmul.f32 %v273, %v470
        %v535 = vmul.f32 %v274, %v471
        %v536 = vmul.f32 %v275, %v472
        %v537 = vmul.f32 %v276, %v473
        %v538 = vmul.f32 %v277, %v474
        %v539 = vmul.f32 %v278, %v475
        %v540 = vmul.f32 %v279, %v476
        %v541 = vmul.f32 %v280, %v477
        %v542 = vmul.f32 %v281, %v478
        %v543 = vmul.f32 %v282, %v479
        %v544 = vmul.f32 %v283, %v480
        %v545 = vmul.f32 %v284, %v481
        %v546 = vmax.f32 %v221, %v222
        %v547 = vmax.f32 %v546, %v223
        %v548 = vmax.f32 %v547, %v224
        %549 = vmax.xlane.f32.xlu0 %v548
        %v550 = vpop.xlane.xlu0 %549
        %v551 = vmax.f32 %v225, %v226
        %v552 = vmax.f32 %v551, %v227
        %v553 = vmax.f32 %v552, %v228
        %554 = vmax.xlane.f32.xlu0 %v553
        %v555 = vpop.xlane.xlu0 %554
        %v556 = vmax.f32 %v229, %v230
        %v557 = vmax.f32 %v556, %v231
        %v558 = vmax.f32 %v557, %v232
        %559 = vmax.xlane.f32.xlu0 %v558
        %v560 = vpop.xlane.xlu0 %559
        %v561 = vmax.f32 %v233, %v234
        %v562 = vmax.f32 %v561, %v235
        %v563 = vmax.f32 %v562, %v236
        %564 = vmax.xlane.f32.xlu0 %v563
        %v565 = vpop.xlane.xlu0 %564
        %v566 = vmax.f32 %v237, %v238
        %v567 = vmax.f32 %v566, %v239
        %v568 = vmax.f32 %v567, %v240
        %569 = vmax.xlane.f32.xlu0 %v568
        %v570 = vpop.xlane.xlu0 %569
        %v571 = vmax.f32 %v241, %v242
        %v572 = vmax.f32 %v571, %v243
        %v573 = vmax.f32 %v572, %v244
        %574 = vmax.xlane.f32.xlu0 %v573
        %v575 = vpop.xlane.xlu0 %574
        %v576 = vmax.f32 %v245, %v246
        %v577 = vmax.f32 %v576, %v247
        %v578 = vmax.f32 %v577, %v248
        %579 = vmax.xlane.f32.xlu0 %v578
        %v580 = vpop.xlane.xlu0 %579
        %v581 = vmax.f32 %v249, %v250
        %v582 = vmax.f32 %v581, %v251
        %v583 = vmax.f32 %v582, %v252
        %584 = vmax.xlane.f32.xlu0 %v583
        %v585 = vpop.xlane.xlu0 %584
        %v586 = vmax.f32 %v253, %v254
        %v587 = vmax.f32 %v586, %v255
        %v588 = vmax.f32 %v587, %v256
        %589 = vmax.xlane.f32.xlu0 %v588
        %v590 = vpop.xlane.xlu0 %589
        %v591 = vmax.f32 %v257, %v258
        %v592 = vmax.f32 %v591, %v259
        %v593 = vmax.f32 %v592, %v260
        %594 = vmax.xlane.f32.xlu0 %v593
        %v595 = vpop.xlane.xlu0 %594
        %v596 = vmax.f32 %v261, %v262
        %v597 = vmax.f32 %v596, %v263
        %v598 = vmax.f32 %v597, %v264
        %599 = vmax.xlane.f32.xlu0 %v598
        %v600 = vpop.xlane.xlu0 %599
        %v601 = vmax.f32 %v265, %v266
        %v602 = vmax.f32 %v601, %v267
        %v603 = vmax.f32 %v602, %v268
        %604 = vmax.xlane.f32.xlu0 %v603
        %v605 = vpop.xlane.xlu0 %604
        %v606 = vmax.f32 %v269, %v270
        %v607 = vmax.f32 %v606, %v271
        %v608 = vmax.f32 %v607, %v272
        %609 = vmax.xlane.f32.xlu0 %v608
        %v610 = vpop.xlane.xlu0 %609
        %v611 = vmax.f32 %v273, %v274
        %v612 = vmax.f32 %v611, %v275
        %v613 = vmax.f32 %v612, %v276
        %614 = vmax.xlane.f32.xlu0 %v613
        %v615 = vpop.xlane.xlu0 %614
        %v616 = vmax.f32 %v277, %v278
        %v617 = vmax.f32 %v616, %v279
        %v618 = vmax.f32 %v617, %v280
        %619 = vmax.xlane.f32.xlu0 %v618
        %v620 = vpop.xlane.xlu0 %619
        %v621 = vmax.f32 %v281, %v282
        %v622 = vmax.f32 %v621, %v283
        %v623 = vmax.f32 %v622, %v284
        %624 = vmax.xlane.f32.xlu0 %v623
        %v625 = vpop.xlane.xlu0 %624
        %v626 = vsub.f32 %v221, %v550
        %v627 = vsub.f32 %v222, %v550
        %v628 = vsub.f32 %v223, %v550
        %v629 = vsub.f32 %v224, %v550
        %v630 = vsub.f32 %v225, %v555
        %v631 = vsub.f32 %v226, %v555
        %v632 = vsub.f32 %v227, %v555
        %v633 = vsub.f32 %v228, %v555
        %v634 = vsub.f32 %v229, %v560
        %v635 = vsub.f32 %v230, %v560
        %v636 = vsub.f32 %v231, %v560
        %v637 = vsub.f32 %v232, %v560
        %v638 = vsub.f32 %v233, %v565
        %v639 = vsub.f32 %v234, %v565
        %v640 = vsub.f32 %v235, %v565
        %v641 = vsub.f32 %v236, %v565
        %v642 = vsub.f32 %v237, %v570
        %v643 = vsub.f32 %v238, %v570
        %v644 = vsub.f32 %v239, %v570
        %v645 = vsub.f32 %v240, %v570
        %v646 = vsub.f32 %v241, %v575
        %v647 = vsub.f32 %v242, %v575
        %v648 = vsub.f32 %v243, %v575
        %v649 = vsub.f32 %v244, %v575
        %v650 = vsub.f32 %v245, %v580
        %v651 = vsub.f32 %v246, %v580
        %v652 = vsub.f32 %v247, %v580
        %v653 = vsub.f32 %v248, %v580
        %v654 = vsub.f32 %v249, %v585
        %v655 = vsub.f32 %v250, %v585
        %v656 = vsub.f32 %v251, %v585
        %v657 = vsub.f32 %v252, %v585
        %v658 = vsub.f32 %v253, %v590
        %v659 = vsub.f32 %v254, %v590
        %v660 = vsub.f32 %v255, %v590
        %v661 = vsub.f32 %v256, %v590
        %v662 = vsub.f32 %v257, %v595
        %v663 = vsub.f32 %v258, %v595
        %v664 = vsub.f32 %v259, %v595
        %v665 = vsub.f32 %v260, %v595
        %v666 = vsub.f32 %v261, %v600
        %v667 = vsub.f32 %v262, %v600
        %v668 = vsub.f32 %v263, %v600
        %v669 = vsub.f32 %v264, %v600
        %v670 = vsub.f32 %v265, %v605
        %v671 = vsub.f32 %v266, %v605
        %v672 = vsub.f32 %v267, %v605
        %v673 = vsub.f32 %v268, %v605
        %v674 = vsub.f32 %v269, %v610
        %v675 = vsub.f32 %v270, %v610
        %v676 = vsub.f32 %v271, %v610
        %v677 = vsub.f32 %v272, %v610
        %v678 = vsub.f32 %v273, %v615
        %v679 = vsub.f32 %v274, %v615
        %v680 = vsub.f32 %v275, %v615
        %v681 = vsub.f32 %v276, %v615
        %v682 = vsub.f32 %v277, %v620
        %v683 = vsub.f32 %v278, %v620
        %v684 = vsub.f32 %v279, %v620
        %v685 = vsub.f32 %v280, %v620
        %v686 = vsub.f32 %v281, %v625
        %v687 = vsub.f32 %v282, %v625
        %v688 = vsub.f32 %v283, %v625
        %v689 = vsub.f32 %v284, %v625
        %v690 = vmul.f32 %v626, 1.442695
        %v691 = vpow.pop %v690
        %v692 = vmul.f32 %v627, 1.442695
        %v693 = vpow.pop %v692
        %v694 = vmul.f32 %v628, 1.442695
        %v695 = vpow.pop %v694
        %v696 = vmul.f32 %v629, 1.442695
        %v697 = vpow.pop %v696
        %v698 = vmul.f32 %v630, 1.442695
        %v699 = vpow.pop %v698
        %v700 = vmul.f32 %v631, 1.442695
        %v701 = vpow.pop %v700
        %v702 = vmul.f32 %v632, 1.442695
        %v703 = vpow.pop %v702
        %v704 = vmul.f32 %v633, 1.442695
        %v705 = vpow.pop %v704
        %v706 = vmul.f32 %v634, 1.442695
        %v707 = vpow.pop %v706
        %v708 = vmul.f32 %v635, 1.442695
        %v709 = vpow.pop %v708
        %v710 = vmul.f32 %v636, 1.442695
        %v711 = vpow.pop %v710
        %v712 = vmul.f32 %v637, 1.442695
        %v713 = vpow.pop %v712
        %v714 = vmul.f32 %v638, 1.442695
        %v715 = vpow.pop %v714
        %v716 = vmul.f32 %v639, 1.442695
        %v717 = vpow.pop %v716
        %v718 = vmul.f32 %v640, 1.442695
        %v719 = vpow.pop %v718
        %v720 = vmul.f32 %v641, 1.442695
        %v721 = vpow.pop %v720
        %v722 = vmul.f32 %v642, 1.442695
        %v723 = vpow.pop %v722
        %v724 = vmul.f32 %v643, 1.442695
        %v725 = vpow.pop %v724
        %v726 = vmul.f32 %v644, 1.442695
        %v727 = vpow.pop %v726
        %v728 = vmul.f32 %v645, 1.442695
        %v729 = vpow.pop %v728
        %v730 = vmul.f32 %v646, 1.442695
        %v731 = vpow.pop %v730
        %v732 = vmul.f32 %v647, 1.442695
        %v733 = vpow.pop %v732
        %v734 = vmul.f32 %v648, 1.442695
        %v735 = vpow.pop %v734
        %v736 = vmul.f32 %v649, 1.442695
        %v737 = vpow.pop %v736
        %v738 = vmul.f32 %v650, 1.442695
        %v739 = vpow.pop %v738
        %v740 = vmul.f32 %v651, 1.442695
        %v741 = vpow.pop %v740
        %v742 = vmul.f32 %v652, 1.442695
        %v743 = vpow.pop %v742
        %v744 = vmul.f32 %v653, 1.442695
        %v745 = vpow.pop %v744
        %v746 = vmul.f32 %v654, 1.442695
        %v747 = vpow.pop %v746
        %v748 = vmul.f32 %v655, 1.442695
        %v749 = vpow.pop %v748
        %v750 = vmul.f32 %v656, 1.442695
        %v751 = vpow.pop %v750
        %v752 = vmul.f32 %v657, 1.442695
        %v753 = vpow.pop %v752
        %v754 = vmul.f32 %v658, 1.442695
        %v755 = vpow.pop %v754
        %v756 = vmul.f32 %v659, 1.442695
        %v757 = vpow.pop %v756
        %v758 = vmul.f32 %v660, 1.442695
        %v759 = vpow.pop %v758
        %v760 = vmul.f32 %v661, 1.442695
        %v761 = vpow.pop %v760
        %v762 = vmul.f32 %v662, 1.442695
        %v763 = vpow.pop %v762
        %v764 = vmul.f32 %v663, 1.442695
        %v765 = vpow.pop %v764
        %v766 = vmul.f32 %v664, 1.442695
        %v767 = vpow.pop %v766
        %v768 = vmul.f32 %v665, 1.442695
        %v769 = vpow.pop %v768
        %v770 = vmul.f32 %v666, 1.442695
        %v771 = vpow.pop %v770
        %v772 = vmul.f32 %v667, 1.442695
        %v773 = vpow.pop %v772
        %v774 = vmul.f32 %v668, 1.442695
        %v775 = vpow.pop %v774
        %v776 = vmul.f32 %v669, 1.442695
        %v777 = vpow.pop %v776
        %v778 = vmul.f32 %v670, 1.442695
        %v779 = vpow.pop %v778
        %v780 = vmul.f32 %v671, 1.442695
        %v781 = vpow.pop %v780
        %v782 = vmul.f32 %v672, 1.442695
        %v783 = vpow.pop %v782
        %v784 = vmul.f32 %v673, 1.442695
        %v785 = vpow.pop %v784
        %v786 = vmul.f32 %v674, 1.442695
        %v787 = vpow.pop %v786
        %v788 = vmul.f32 %v675, 1.442695
        %v789 = vpow.pop %v788
        %v790 = vmul.f32 %v676, 1.442695
        %v791 = vpow.pop %v790
        %v792 = vmul.f32 %v677, 1.442695
        %v793 = vpow.pop %v792
        %v794 = vmul.f32 %v678, 1.442695
        %v795 = vpow.pop %v794
        %v796 = vmul.f32 %v679, 1.442695
        %v797 = vpow.pop %v796
        %v798 = vmul.f32 %v680, 1.442695
        %v799 = vpow.pop %v798
        %v800 = vmul.f32 %v681, 1.442695
        %v801 = vpow.pop %v800
        %v802 = vmul.f32 %v682, 1.442695
        %v803 = vpow.pop %v802
        %v804 = vmul.f32 %v683, 1.442695
        %v805 = vpow.pop %v804
        %v806 = vmul.f32 %v684, 1.442695
        %v807 = vpow.pop %v806
        %v808 = vmul.f32 %v685, 1.442695
        %v809 = vpow.pop %v808
        %v810 = vmul.f32 %v686, 1.442695
        %v811 = vpow.pop %v810
        %v812 = vmul.f32 %v687, 1.442695
        %v813 = vpow.pop %v812
        %v814 = vmul.f32 %v688, 1.442695
        %v815 = vpow.pop %v814
        %v816 = vmul.f32 %v689, 1.442695
        %v817 = vpow.pop %v816
        %v818 = vadd.f32 %v691, %v693
        %v819 = vadd.f32 %v818, %v695
        %v820 = vadd.f32 %v819, %v697
        %821 = vadd.xlane.f32.xlu0 %v820
        %v822 = vpop.xlane.xlu0 %821
        %v823 = vadd.f32 %v699, %v701
        %v824 = vadd.f32 %v823, %v703
        %v825 = vadd.f32 %v824, %v705
        %826 = vadd.xlane.f32.xlu0 %v825
        %v827 = vpop.xlane.xlu0 %826
        %v828 = vadd.f32 %v707, %v709
        %v829 = vadd.f32 %v828, %v711
        %v830 = vadd.f32 %v829, %v713
        %831 = vadd.xlane.f32.xlu0 %v830
        %v832 = vpop.xlane.xlu0 %831
        %v833 = vadd.f32 %v715, %v717
        %v834 = vadd.f32 %v833, %v719
        %v835 = vadd.f32 %v834, %v721
        %836 = vadd.xlane.f32.xlu0 %v835
        %v837 = vpop.xlane.xlu0 %836
        %v838 = vadd.f32 %v723, %v725
        %v839 = vadd.f32 %v838, %v727
        %v840 = vadd.f32 %v839, %v729
        %841 = vadd.xlane.f32.xlu0 %v840
        %v842 = vpop.xlane.xlu0 %841
        %v843 = vadd.f32 %v731, %v733
        %v844 = vadd.f32 %v843, %v735
        %v845 = vadd.f32 %v844, %v737
        %846 = vadd.xlane.f32.xlu0 %v845
        %v847 = vpop.xlane.xlu0 %846
        %v848 = vadd.f32 %v739, %v741
        %v849 = vadd.f32 %v848, %v743
        %v850 = vadd.f32 %v849, %v745
        %851 = vadd.xlane.f32.xlu0 %v850
        %v852 = vpop.xlane.xlu0 %851
        %v853 = vadd.f32 %v747, %v749
        %v854 = vadd.f32 %v853, %v751
        %v855 = vadd.f32 %v854, %v753
        %856 = vadd.xlane.f32.xlu0 %v855
        %v857 = vpop.xlane.xlu0 %856
        %v858 = vadd.f32 %v755, %v757
        %v859 = vadd.f32 %v858, %v759
        %v860 = vadd.f32 %v859, %v761
        %861 = vadd.xlane.f32.xlu0 %v860
        %v862 = vpop.xlane.xlu0 %861
        %v863 = vadd.f32 %v763, %v765
        %v864 = vadd.f32 %v863, %v767
        %v865 = vadd.f32 %v864, %v769
        %866 = vadd.xlane.f32.xlu0 %v865
        %v867 = vpop.xlane.xlu0 %866
        %v868 = vadd.f32 %v771, %v773
        %v869 = vadd.f32 %v868, %v775
        %v870 = vadd.f32 %v869, %v777
        %871 = vadd.xlane.f32.xlu0 %v870
        %v872 = vpop.xlane.xlu0 %871
        %v873 = vadd.f32 %v779, %v781
        %v874 = vadd.f32 %v873, %v783
        %v875 = vadd.f32 %v874, %v785
        %876 = vadd.xlane.f32.xlu0 %v875
        %v877 = vpop.xlane.xlu0 %876
        %v878 = vadd.f32 %v787, %v789
        %v879 = vadd.f32 %v878, %v791
        %v880 = vadd.f32 %v879, %v793
        %881 = vadd.xlane.f32.xlu0 %v880
        %v882 = vpop.xlane.xlu0 %881
        %v883 = vadd.f32 %v795, %v797
        %v884 = vadd.f32 %v883, %v799
        %v885 = vadd.f32 %v884, %v801
        %886 = vadd.xlane.f32.xlu0 %v885
        %v887 = vpop.xlane.xlu0 %886
        %v888 = vadd.f32 %v803, %v805
        %v889 = vadd.f32 %v888, %v807
        %v890 = vadd.f32 %v889, %v809
        %891 = vadd.xlane.f32.xlu0 %v890
        %v892 = vpop.xlane.xlu0 %891
        %v893 = vadd.f32 %v811, %v813
        %v894 = vadd.f32 %v893, %v815
        %v895 = vadd.f32 %v894, %v817
        %896 = vadd.xlane.f32.xlu0 %v895
        %v897 = vpop.xlane.xlu0 %896
        %v898 = vlog2.pop %v822
        %v899 = vmul.f32 %v898, 0.6931472
        %v900 = vlog2.pop %v827
        %v901 = vmul.f32 %v900, 0.6931472
        %v902 = vlog2.pop %v832
        %v903 = vmul.f32 %v902, 0.6931472
        %v904 = vlog2.pop %v837
        %v905 = vmul.f32 %v904, 0.6931472
        %v906 = vlog2.pop %v842
        %v907 = vmul.f32 %v906, 0.6931472
        %v908 = vlog2.pop %v847
        %v909 = vmul.f32 %v908, 0.6931472
        %v910 = vlog2.pop %v852
        %v911 = vmul.f32 %v910, 0.6931472
        %v912 = vlog2.pop %v857
        %v913 = vmul.f32 %v912, 0.6931472
        %v914 = vlog2.pop %v862
        %v915 = vmul.f32 %v914, 0.6931472
        %v916 = vlog2.pop %v867
        %v917 = vmul.f32 %v916, 0.6931472
        %v918 = vlog2.pop %v872
        %v919 = vmul.f32 %v918, 0.6931472
        %v920 = vlog2.pop %v877
        %v921 = vmul.f32 %v920, 0.6931472
        %v922 = vlog2.pop %v882
        %v923 = vmul.f32 %v922, 0.6931472
        %v924 = vlog2.pop %v887
        %v925 = vmul.f32 %v924, 0.6931472
        %v926 = vlog2.pop %v892
        %v927 = vmul.f32 %v926, 0.6931472
        %v928 = vlog2.pop %v897
        %v929 = vmul.f32 %v928, 0.6931472
        %v930 = vadd.f32 %v550, %v899
        %v931 = vadd.f32 %v555, %v901
        %v932 = vadd.f32 %v560, %v903
        %v933 = vadd.f32 %v565, %v905
        %v934 = vadd.f32 %v570, %v907
        %v935 = vadd.f32 %v575, %v909
        %v936 = vadd.f32 %v580, %v911
        %v937 = vadd.f32 %v585, %v913
        %v938 = vadd.f32 %v590, %v915
        %v939 = vadd.f32 %v595, %v917
        %v940 = vadd.f32 %v600, %v919
        %v941 = vadd.f32 %v605, %v921
        %v942 = vadd.f32 %v610, %v923
        %v943 = vadd.f32 %v615, %v925
        %v944 = vadd.f32 %v620, %v927
        %v945 = vadd.f32 %v625, %v929
        %v946 = vadd.f32 %v482, %v483
        %v947 = vadd.f32 %v946, %v484
        %v948 = vadd.f32 %v947, %v485
        %949 = vadd.xlane.f32.xlu0 %v948
        %v950 = vpop.xlane.xlu0 %949
        %v951 = vadd.f32 %v486, %v487
        %v952 = vadd.f32 %v951, %v488
        %v953 = vadd.f32 %v952, %v489
        %954 = vadd.xlane.f32.xlu0 %v953
        %v955 = vpop.xlane.xlu0 %954
        %v956 = vadd.f32 %v490, %v491
        %v957 = vadd.f32 %v956, %v492
        %v958 = vadd.f32 %v957, %v493
        %959 = vadd.xlane.f32.xlu0 %v958
        %v960 = vpop.xlane.xlu0 %959
        %v961 = vadd.f32 %v494, %v495
        %v962 = vadd.f32 %v961, %v496
        %v963 = vadd.f32 %v962, %v497
        %964 = vadd.xlane.f32.xlu0 %v963
        %v965 = vpop.xlane.xlu0 %964
        %v966 = vadd.f32 %v498, %v499
        %v967 = vadd.f32 %v966, %v500
        %v968 = vadd.f32 %v967, %v501
        %969 = vadd.xlane.f32.xlu0 %v968
        %v970 = vpop.xlane.xlu0 %969
        %v971 = vadd.f32 %v502, %v503
        %v972 = vadd.f32 %v971, %v504
        %v973 = vadd.f32 %v972, %v505
        %974 = vadd.xlane.f32.xlu0 %v973
        %v975 = vpop.xlane.xlu0 %974
        %v976 = vadd.f32 %v506, %v507
        %v977 = vadd.f32 %v976, %v508
        %v978 = vadd.f32 %v977, %v509
        %979 = vadd.xlane.f32.xlu0 %v978
        %v980 = vpop.xlane.xlu0 %979
        %v981 = vadd.f32 %v510, %v511
        %v982 = vadd.f32 %v981, %v512
        %v983 = vadd.f32 %v982, %v513
        %984 = vadd.xlane.f32.xlu0 %v983
        %v985 = vpop.xlane.xlu0 %984
        %v986 = vadd.f32 %v514, %v515
        %v987 = vadd.f32 %v986, %v516
        %v988 = vadd.f32 %v987, %v517
        %989 = vadd.xlane.f32.xlu0 %v988
        %v990 = vpop.xlane.xlu0 %989
        %v991 = vadd.f32 %v518, %v519
        %v992 = vadd.f32 %v991, %v520
        %v993 = vadd.f32 %v992, %v521
        %994 = vadd.xlane.f32.xlu0 %v993
        %v995 = vpop.xlane.xlu0 %994
        %v996 = vadd.f32 %v522, %v523
        %v997 = vadd.f32 %v996, %v524
        %v998 = vadd.f32 %v997, %v525
        %999 = vadd.xlane.f32.xlu0 %v998
        %v1000 = vpop.xlane.xlu0 %999
        %v1001 = vadd.f32 %v526, %v527
        %v1002 = vadd.f32 %v1001, %v528
        %v1003 = vadd.f32 %v1002, %v529
        %1004 = vadd.xlane.f32.xlu0 %v1003
        %v1005 = vpop.xlane.xlu0 %1004
        %v1006 = vadd.f32 %v530, %v531
        %v1007 = vadd.f32 %v1006, %v532
        %v1008 = vadd.f32 %v1007, %v533
        %1009 = vadd.xlane.f32.xlu0 %v1008
        %v1010 = vpop.xlane.xlu0 %1009
        %v1011 = vadd.f32 %v534, %v535
        %v1012 = vadd.f32 %v1011, %v536
        %v1013 = vadd.f32 %v1012, %v537
        %1014 = vadd.xlane.f32.xlu0 %v1013
        %v1015 = vpop.xlane.xlu0 %1014
        %v1016 = vadd.f32 %v538, %v539
        %v1017 = vadd.f32 %v1016, %v540
        %v1018 = vadd.f32 %v1017, %v541
        %1019 = vadd.xlane.f32.xlu0 %v1018
        %v1020 = vpop.xlane.xlu0 %1019
        %v1021 = vadd.f32 %v542, %v543
        %v1022 = vadd.f32 %v1021, %v544
        %v1023 = vadd.f32 %v1022, %v545
        %1024 = vadd.xlane.f32.xlu0 %v1023
        %v1025 = vpop.xlane.xlu0 %1024
        %v1026 = vsub.f32 %v930, %v950
        %v1027 = vsub.f32 %v931, %v955
        %v1028 = vsub.f32 %v932, %v960
        %v1029 = vsub.f32 %v933, %v965
        %v1030 = vsub.f32 %v934, %v970
        %v1031 = vsub.f32 %v935, %v975
        %v1032 = vsub.f32 %v936, %v980
        %v1033 = vsub.f32 %v937, %v985
        %v1034 = vsub.f32 %v938, %v990
        %v1035 = vsub.f32 %v939, %v995
        %v1036 = vsub.f32 %v940, %v1000
        %v1037 = vsub.f32 %v941, %v1005
        %v1038 = vsub.f32 %v942, %v1010
        %v1039 = vsub.f32 %v943, %v1015
        %v1040 = vsub.f32 %v944, %v1020
        %v1041 = vsub.f32 %v945, %v1025
        %vm1042 = vcmask 7168
        %1043 = vst.msk [vmem:[%s187] sm:$0xff] %vm1042, %v1026
        %1044 = vst.msk [vmem:[%s187 + $0x8] sm:$0xff] %vm1042, %v1027
        %1045 = vst.msk [vmem:[%s187 + $0x10] sm:$0xff] %vm1042, %v1028
        %1046 = vst.msk [vmem:[%s187 + $0x18] sm:$0xff] %vm1042, %v1029
        %1047 = vst.msk [vmem:[%s187 + $0x20] sm:$0xff] %vm1042, %v1030
        %1048 = vst.msk [vmem:[%s187 + $0x28] sm:$0xff] %vm1042, %v1031
        %1049 = vst.msk [vmem:[%s187 + $0x30] sm:$0xff] %vm1042, %v1032
        %1050 = vst.msk [vmem:[%s187 + $0x38] sm:$0xff] %vm1042, %v1033
        %1051 = vst.msk [vmem:[%s187 + $0x40] sm:$0xff] %vm1042, %v1034
        %1052 = vst.msk [vmem:[%s187 + $0x48] sm:$0xff] %vm1042, %v1035
        %1053 = vst.msk [vmem:[%s187 + $0x50] sm:$0xff] %vm1042, %v1036
        %1054 = vst.msk [vmem:[%s187 + $0x58] sm:$0xff] %vm1042, %v1037
        %1055 = vst.msk [vmem:[%s187 + $0x60] sm:$0xff] %vm1042, %v1038
        %1056 = vst.msk [vmem:[%s187 + $0x68] sm:$0xff] %vm1042, %v1039
        %1057 = vst.msk [vmem:[%s187 + $0x70] sm:$0xff] %vm1042, %v1040
        %1058 = vst.msk [vmem:[%s187 + $0x78] sm:$0xff] %vm1042, %v1041
        %s1059 = smul.u32 16, %s16
        %p1060 = scmp.lt.s32.totalorder %s1059, 31
        %s1061 = scalar_select %p1060, %s1059, 31
        %s1062 = smul.addr %s1061, 8
        %s1063 = scalar_lea.vmem %s2, %s1062
        // Predicated region
        $region33: #{tpu_custom_call.1} parent=27 // pred_check
          %p1064 = pneg %p86
        $region34: #{tpu_custom_call.1} parent=27 // pred_check_branch
          %1066 = sbr.rel (%p1064) target = $region36
        $region35: #{tpu_custom_call.1} parent=27 // pred_region
          %s1067 = smul.u32 16, %s16
        $region36: #{tpu_custom_call.1} parent=27 // pred_fallthru
          _
      $region28: #{tpu_custom_call.1} parent=5 // pred_fallthru
        _
      %p1068 = scmp.le.s32.totalorder 2, %s11
      // Predicated region
      $region37: #{tpu_custom_call.1} parent=5 // pred_check
        %p1069 = pneg %p1068
      $region38: #{tpu_custom_call.1} parent=5 // pred_check_branch
        %1071 = sbr.rel (%p1069) target = $region40
      $region39: #{tpu_custom_call.1} parent=5 // pred_region
        %s1072 = ssub.s32 %s11, 2
        // Predicated region
        $region41: #{tpu_custom_call.1} parent=39 // pred_check
          %p1073 = pneg %p92
        $region42: #{tpu_custom_call.1} parent=39 // pred_check_branch
          %1075 = sbr.rel (%p1073) target = $region44
        $region43: #{tpu_custom_call.1} parent=39 // pred_region
          %s1076 = smul.u32 16, %s17
          %p1077 = scmp.lt.s32.totalorder %s1076, 31
          %s1078 = scalar_select %p1077, %s1076, 31
          %s1079 = smul.addr %s1078, 8
          %s1080 = scalar_lea.vmem %s2, %s1079
        $region44: #{tpu_custom_call.1} parent=39 // pred_fallthru
          _
      $region40: #{tpu_custom_call.1} parent=5 // pred_fallthru
        _
    $region6: #{tpu_custom_call.1} parent=1 // loop_footer
      %s15 = sadd.s32 1, %s11
    $region7: #{tpu_custom_call.1} parent=1 // loop_footer_branch
      %10 = sbr.rel target = $region3
    $region8: #{tpu_custom_call.1} parent=1 // loop_exit
      _
    %1081 = vsyncpa [#allocation3], 1
    %s1082 = scalar_lea.sflag [#allocation3], 1
    %1083 = vsyncpa %s1082, 1

</llo_original>
